<compile_context>
chip_gen: v7x
topology: tpu7x:2x2x1
jax: 0.10.0
libtpu: 0.0.40
codegen_flags: <defaults>
</compile_context>

<pallas_src>
import math
import functools

import jax
import jax.numpy as jnp
from jax.experimental import pallas as pl
from jax.experimental.pallas import tpu as pltpu

EPS = 1e-5  # nn.InstanceNorm1d default eps

_UNSET = object()
_RESIDENT_MODE = _UNSET
_VMEM_LIMIT = _UNSET


# --------------------------- small infra helpers -----------------------------

def _resident_mode():
    """pl.Buffered(1) for revisited whole-array operands (halves their VMEM);
    probed once and cached, falls back to the default pipeline mode if the
    running jax rejects single-buffering."""
    global _RESIDENT_MODE
    if _RESIDENT_MODE is _UNSET:
        try:
            def _copy(x_ref, o_ref):
                o_ref[...] = x_ref[...]
            jax.block_until_ready(pl.pallas_call(
                _copy,
                grid=(2,),
                in_specs=[pl.BlockSpec((8, 128), lambda i: (0, 0),
                                       pipeline_mode=pl.Buffered(1))],
                out_specs=pl.BlockSpec((8, 128), lambda i: (i, 0)),
                out_shape=jax.ShapeDtypeStruct((16, 128), jnp.float32),
            )(jnp.zeros((8, 128), jnp.float32)))
            _RESIDENT_MODE = pl.Buffered(1)
        except Exception:
            _RESIDENT_MODE = None
    return _RESIDENT_MODE


def _vmem_limit_bytes():
    """~75% of physical VMEM (=> ~96 MiB on v5e/v6e, ~48 MiB on v7x)."""
    global _VMEM_LIMIT
    if _VMEM_LIMIT is _UNSET:
        try:
            cap = pltpu.get_tpu_info().vmem_capacity_bytes
            _VMEM_LIMIT = int(cap * 3 // 4)
        except Exception:
            _VMEM_LIMIT = None  # fall back to the default scoped limit
    return _VMEM_LIMIT


def _compiler_params(dims):
    return pltpu.CompilerParams(dimension_semantics=dims,
                                vmem_limit_bytes=_vmem_limit_bytes())


def _resident_spec(a):
    """Whole-array operand whose block index never changes across the grid."""
    nd = a.ndim
    return pl.BlockSpec(a.shape, lambda *_: (0,) * nd,
                        pipeline_mode=_resident_mode())


# --------------------------- generic tiled launcher --------------------------

def _tiled_rows_call(kernel, x, consts, n_out, tile_m=512):
    """Run `kernel(x_tile_ref, *const_refs, o_ref)` tiled over rows of x.

    x: (M, K).  consts are resident (single-buffered).  Output (M, n_out) f32.
    No pad/slice round-trip: the ragged final block is clipped at writeback.
    """
    M, K = x.shape
    tm = M if M <= tile_m else tile_m
    return pl.pallas_call(
        kernel,
        grid=(pl.cdiv(M, tm),),
        in_specs=[pl.BlockSpec((tm, K), lambda i: (i, 0))]
                 + [_resident_spec(c) for c in consts],
        out_specs=pl.BlockSpec((tm, n_out), lambda i: (i, 0)),
        out_shape=jax.ShapeDtypeStruct((M, n_out), jnp.float32),
        compiler_params=_compiler_params(("parallel",)),
    )(x, *consts)


# ----------------------------- Pallas kernels -------------------------------

def _linear_kernel(x_ref, w_ref, b_ref, o_ref, *, activation):
    # bf16 MXU matmul, f32 accumulation; elementwise math in f32.
    y = jnp.dot(x_ref[...].astype(jnp.bfloat16), w_ref[...],
                preferred_element_type=jnp.float32) + b_ref[...]
    if activation == "relu":
        y = jnp.maximum(y, 0.0)
    elif activation == "silu":
        # numerically robust sigmoid (tanh form, maps to EUP)
        y = y * (0.5 * (jnp.tanh(0.5 * y) + 1.0))
    o_ref[...] = y.astype(o_ref.dtype)


def pallas_linear(x, w, b, activation=None, tile_m=512):
    """x: (M, K), w: (K, N) bf16, b: (1, N) f32 -> (M, N) f32, row-tiled."""
    return _tiled_rows_call(
        functools.partial(_linear_kernel, activation=activation),
        x, (w, b), w.shape[1], tile_m)


def _analog_hidden_kernel(x_ref, w1, b1, w2, b2, o_ref):
    """Fused analog_mlp front: Linear -> ReLU -> Linear (D -> D -> D/2)."""
    a = jnp.dot(x_ref[...].astype(jnp.bfloat16), w1[...],
                preferred_element_type=jnp.float32) + b1[...]
    a = jnp.maximum(a, 0.0)
    a = jnp.dot(a.astype(jnp.bfloat16), w2[...],
                preferred_element_type=jnp.float32) + b2[...]
    o_ref[...] = a.astype(o_ref.dtype)


def analog_mlp(x, P, tile_m=512):
    """analog_mlp(x): the two wide layers run fused in Pallas; the final
    (D/2 -> out_channels) projection is done in plain JAX because a <128-lane
    Pallas out_spec forces masked partial stores every grid step."""
    hid = _tiled_rows_call(_analog_hidden_kernel, x,
                           (P["an_w1"], P["an_b1"], P["an_w2"], P["an_b2"]),
                           P["an_w2"].shape[1], tile_m)
    return jnp.dot(hid.astype(jnp.bfloat16), P["an_w3"],
                   preferred_element_type=jnp.float32) + P["an_b3"]


def _embed_kernel(xe_ref, cc_ref, t_ref, wi_ref, bi_ref, wc_ref, bc_ref,
                  h_ref, ce_ref):
    """Fused input_emb + cond_emb + time broadcast add; one batch element per step."""
    inp = jnp.dot(xe_ref[...].astype(jnp.bfloat16), wi_ref[...],
                  preferred_element_type=jnp.float32) + bi_ref[...]
    cond = jnp.dot(cc_ref[...].astype(jnp.bfloat16), wc_ref[...],
                   preferred_element_type=jnp.float32) + bc_ref[...]
    ce_ref[...] = cond.astype(ce_ref.dtype)
    h_ref[...] = (inp + cond + t_ref[...]).astype(h_ref.dtype)   # (1,D) broadcasts


def embed_fused(x_exp, cond_cat, time_emb, P):
    """x_exp (B,S,Ci), cond_cat (B,S,Cc), time_emb (B,D) -> (h, cond_emb) both (B,S,D)."""
    B, S, Ci = x_exp.shape
    Cc = cond_cat.shape[-1]
    D = P["inp_w"].shape[1]
    time3 = time_emb[:, None, :]  # (B, 1, D)
    return pl.pallas_call(
        _embed_kernel,
        grid=(B,),
        in_specs=[pl.BlockSpec((None, S, Ci), lambda b: (b, 0, 0)),
                  pl.BlockSpec((None, S, Cc), lambda b: (b, 0, 0)),
                  pl.BlockSpec((None, 1, D), lambda b: (b, 0, 0)),
                  _resident_spec(P["inp_w"]), _resident_spec(P["inp_b"]),
                  _resident_spec(P["cond_w"]), _resident_spec(P["cond_b"])],
        out_specs=(pl.BlockSpec((None, S, D), lambda b: (b, 0, 0)),
                   pl.BlockSpec((None, S, D), lambda b: (b, 0, 0))),
        out_shape=(jax.ShapeDtypeStruct((B, S, D), jnp.float32),
                   jax.ShapeDtypeStruct((B, S, D), jnp.float32)),
        compiler_params=_compiler_params(("parallel",)),
    )(x_exp, cond_cat, time3, P["inp_w"], P["inp_b"], P["cond_w"], P["cond_b"])


def _instance_norm(v):
    # nn.InstanceNorm1d applied to a (S, D) tensor normalizes over the last
    # axis per row, no affine, biased variance, eps=1e-5.
    mu = jnp.mean(v, axis=-1, keepdims=True)
    var = jnp.mean((v - mu) ** 2, axis=-1, keepdims=True)
    return (v - mu) * jax.lax.rsqrt(var + EPS)


def _mha(xn, mask, wqkv_ref, bqkv_ref, wo_ref, bo_ref, num_heads):
    """nn.MultiheadAttention self-attention (eval mode) on one batch element.

    xn: (S, D) f32.  wqkv: (D, 3D) bf16 = in_proj_weight.T, bqkv: (1, 3D) f32,
    wo: (D, D) bf16 = out_proj.weight.T, bo: (1, D) f32.
    mask: additive (S, S) bf16 value (upcast for free in the f32 score add), or
    None to skip the mask add entirely.
    """
    S, D = xn.shape
    dh = D // num_heads
    scale = 1.0 / math.sqrt(dh)

    qkv = jnp.dot(xn.astype(jnp.bfloat16), wqkv_ref[...],
                  preferred_element_type=jnp.float32) + bqkv_ref[...]

    # (S, D) -> (H, S, dh): single batched dot_general pair over all heads
    # instead of an unrolled per-head loop with dh-lane slices.
    def split_heads(a):
        return jnp.transpose(a.reshape(S, num_heads, dh), (1, 0, 2))

    q = split_heads((qkv[:, 0 * D:1 * D] * scale).astype(jnp.bfloat16))
    k = split_heads(qkv[:, 1 * D:2 * D].astype(jnp.bfloat16))
    v = split_heads(qkv[:, 2 * D:3 * D].astype(jnp.bfloat16))

    s = jnp.einsum('hqd,hkd->hqk', q, k, preferred_element_type=jnp.float32)
    if mask is not None:
        s = s + mask[None]
    s = s - jnp.max(s, axis=-1, keepdims=True)
    p = jnp.exp(s)
    # EUP approximate reciprocal (separate issue slot, ~free); flip approx=False
    # for strict PyTorch-parity tests.
    p = p * pl.reciprocal(jnp.sum(p, axis=-1, keepdims=True), approx=True)

    ctx = jnp.einsum('hqk,hkd->hqd', p.astype(jnp.bfloat16), v,
                     preferred_element_type=jnp.float32)
    ctx = jnp.transpose(ctx, (1, 0, 2)).reshape(S, D).astype(jnp.bfloat16)
    return jnp.dot(ctx, wo_ref[...], preferred_element_type=jnp.float32) + bo_ref[...]


def _encoder_kernel(*refs, num_heads, with_masks):
    """One HouseDiffEncoder layer for one batch element (dropout = eval identity)."""
    if with_masks:
        (x_ref, masks_ref,
         wqkv1, bqkv1, wo1, bo1,
         wqkv2, bqkv2, wo2, bo2,
         wqkv3, bqkv3, wo3, bo3,
         w1, b1, w2, b2, o_ref) = refs
        m_all = masks_ref[...]                    # (3, S, S) bf16
        m1, m2, m3 = m_all[0], m_all[1], m_all[2]
    else:
        (x_ref,
         wqkv1, bqkv1, wo1, bo1,
         wqkv2, bqkv2, wo2, bo2,
         wqkv3, bqkv3, wo3, bo3,
         w1, b1, w2, b2, o_ref) = refs
        m1 = m2 = m3 = None

    x = x_ref[...].astype(jnp.float32)            # (S, D) -- batch dim squeezed
    nx = _instance_norm(x)                        # norm_1
    a1 = _mha(nx, m1, wqkv1, bqkv1, wo1, bo1, num_heads)
    a2 = _mha(nx, m2, wqkv2, bqkv2, wo2, bo2, num_heads)
    a3 = _mha(nx, m3, wqkv3, bqkv3, wo3, bo3, num_heads)
    attended = x + a1 + a2 + a3
    n2 = _instance_norm(attended)                 # norm_2
    h = jnp.maximum(jnp.dot(n2.astype(jnp.bfloat16), w1[...],
                            preferred_element_type=jnp.float32) + b1[...], 0.0)
    y = jnp.dot(h.astype(jnp.bfloat16), w2[...],
                preferred_element_type=jnp.float32) + b2[...]
    o_ref[...] = (n2 + y).astype(o_ref.dtype)


def encoder_layer(x, masks3, p, num_heads):
    """Apply one HouseDiffEncoder layer.  x: (B, S, D).  masks3: (3, S, S) bf16
    stacked additive masks, or None (statically-zero masks: skips the mask DMA
    and the three (S,S) adds entirely)."""
    B, S, D = x.shape
    with_masks = masks3 is not None

    weight_args = [p["wqkv1"], p["bqkv1"], p["wo1"], p["bo1"],
                   p["wqkv2"], p["bqkv2"], p["wo2"], p["bo2"],
                   p["wqkv3"], p["bqkv3"], p["wo3"], p["bo3"],
                   p["w1"], p["b1"], p["w2"], p["b2"]]
    x_spec = pl.BlockSpec((None, S, D), lambda b: (b, 0, 0))

    if with_masks:
        args = [x, masks3] + weight_args
        in_specs = [x_spec, _resident_spec(masks3)] \
                   + [_resident_spec(a) for a in weight_args]
    else:
        args = [x] + weight_args
        in_specs = [x_spec] + [_resident_spec(a) for a in weight_args]

    # TODO(synk): v7x at S~1k: q-block tile the attention (online softmax) so
    # the three (S,S) f32 score matrices are never fully live, and to expose a
    # second 'parallel' grid axis for the two TensorCores.
    return pl.pallas_call(
        functools.partial(_encoder_kernel, num_heads=num_heads,
                          with_masks=with_masks),
        grid=(B,),
        in_specs=in_specs,
        out_specs=pl.BlockSpec((None, S, D), lambda b: (b, 0, 0)),
        out_shape=jax.ShapeDtypeStruct((B, S, D), jnp.float32),
        compiler_params=_compiler_params(("parallel",)),
    )(*args)


# ----------------------------- parameter init -------------------------------

def _init_linear(key, fan_in, fan_out):
    k1, k2 = jax.random.split(key)
    w = (jax.random.normal(k1, (fan_in, fan_out), jnp.float32) * 0.05
         ).astype(jnp.bfloat16)                       # MXU weights live in bf16
    b = jax.random.normal(k2, (1, fan_out), jnp.float32) * 0.02
    return w, b


def init_encoder_params(key, dim, hidden=512):
    keys = jax.random.split(key, 5)
    p = {}
    for i in range(3):
        ka, kb = jax.random.split(keys[i])
        p[f"wqkv{i+1}"], p[f"bqkv{i+1}"] = _init_linear(ka, dim, 3 * dim)
        p[f"wo{i+1}"], p[f"bo{i+1}"] = _init_linear(kb, dim, dim)
    p["w1"], p["b1"] = _init_linear(keys[3], dim, hidden)
    p["w2"], p["b2"] = _init_linear(keys[4], hidden, dim)
    return p


def init_model_params(key, in_channels, condition_channels, model_channels, out_channels):
    ks = jax.random.split(key, 16)
    P = {}
    half = model_channels // 2
    P["time_freqs"] = jnp.exp(-math.log(10000.0) *
                              jnp.arange(half, dtype=jnp.float32) / half)
    P["time_w1"], P["time_b1"] = _init_linear(ks[0], model_channels, model_channels)
    P["time_w2"], P["time_b2"] = _init_linear(ks[1], model_channels, model_channels)
    P["inp_w"], P["inp_b"] = _init_linear(ks[2], in_channels, model_channels)
    P["cond_w"], P["cond_b"] = _init_linear(ks[3], condition_channels, model_channels)
    P["layers"] = [init_encoder_params(ks[4 + i], model_channels) for i in range(4)]
    P["an_w1"], P["an_b1"] = _init_linear(ks[8], model_channels, model_channels)
    P["an_w2"], P["an_b2"] = _init_linear(ks[9], model_channels, model_channels // 2)
    P["an_w3"], P["an_b3"] = _init_linear(ks[10], model_channels // 2, out_channels)
    P["bin_w1"], P["bin_b1"] = _init_linear(ks[11], 162 + model_channels, model_channels)
    P["bin_enc1"] = init_encoder_params(ks[12], model_channels)
    P["bin_enc2"] = init_encoder_params(ks[13], model_channels)
    P["bin_w2"], P["bin_b2"] = _init_linear(ks[14], model_channels, 16)
    return P


# ----------------------------- plain-JAX glue --------------------------------

def expand_points(points, connections):
    """points: (B, N, 2), connections: (B, N, 2) int -> (B, N, 18)."""
    idx = connections[:, :, 1].astype(jnp.int32)                      # (B, N)
    connected = jnp.take_along_axis(points, idx[:, :, None], axis=1)  # (B, N, 2)
    avg = lambda a, b: (a + b) / 2
    mid = avg(points, connected)
    quarter = avg(points, mid)
    three_quarter = avg(mid, connected)
    parts = [points, avg(quarter, points), quarter, avg(mid, quarter), mid,
             avg(three_quarter, mid), three_quarter,
             avg(connected, three_quarter), connected]
    return jnp.concatenate(parts, axis=2)


def timestep_embedding(params, timesteps):
    """timesteps: (B,) -> (B, model_channels).  model_channels even so F.pad is a no-op."""
    args = timesteps[:, None].astype(jnp.float32) * params["time_freqs"][None]
    emb = jnp.concatenate([jnp.sin(args), jnp.cos(args)], axis=-1)
    h = pallas_linear(emb, params["time_w1"], params["time_b1"], activation="silu")
    return pallas_linear(h, params["time_w2"], params["time_b2"])


def dec2bin(v, bits=8):
    # TODO(synk): dec2bin is not defined in the reference file; standard
    # house-diffusion 8-bit MSB-first unpack of the integer value is used, with
    # the value clamped to [0, 255] so out-of-range obs cannot wrap / go negative.
    vi = jnp.clip(v, 0.0, 255.0).astype(jnp.int32)
    masks = 2 ** jnp.arange(bits - 1, -1, -1, dtype=jnp.int32)
    return (jnp.bitwise_and(vi[..., None], masks) != 0).astype(jnp.float32)


def house_diff_transformer_forward(params, x, timesteps, xtalpha, epsalpha, *,
                                   connections, door_mask, self_mask, gen_mask,
                                   conditions, model_channels, out_channels):
    B = x.shape[0]
    x_pts = jnp.transpose(x, (0, 2, 1)).astype(jnp.float32)   # (B, S, 2)
    x_exp = expand_points(x_pts, connections)                 # (B, S, 18)
    S = x_exp.shape[1]

    flat = lambda a: a.reshape(B * S, a.shape[-1])
    unflat = lambda a: a.reshape(B, S, a.shape[-1])

    time_emb = timestep_embedding(params, timesteps)                    # (B, D)
    # conditions feed a bf16 matmul only: concatenate directly in bf16 (halves
    # the concat's HBM write and the embed kernel's read).
    cond_cat = jnp.concatenate([c.astype(jnp.bfloat16) for c in conditions], axis=2)

    # fused: input linear + condition linear + time broadcast + sum (1 kernel)
    h, cond_emb = embed_fused(x_exp, cond_cat, time_emb, params)

    # Stack the three additive masks into one (3,S,S) resident bf16 operand.
    # Clamp -inf to a finite large negative so a fully-masked row cannot make
    # the softmax produce NaN.
    masks3 = jnp.stack([door_mask, self_mask, gen_mask]).astype(jnp.float32)
    masks3 = jnp.maximum(masks3, -1e9).astype(jnp.bfloat16)

    # HouseDiffTransformer.forward calls layer(x, door_mask, self_mask, gen_mask)
    # against signature (x, self_mask, door_mask, gen_mask), so attention #1 sees
    # door_mask, #2 sees self_mask, #3 sees gen_mask -- reproduced here.
    for lp in params["layers"]:
        h = encoder_layer(h, masks3, lp, num_heads=4)

    # analog_mlp: two wide layers fused in Pallas, narrow final layer in JAX
    output_decimal = unflat(analog_mlp(flat(h), params))                # (B, S, out)

    # binary branch
    # TODO(synk): the reference shadows `x` with the transformer features before
    # compute_binary_output, which makes the 162+model_channels binary_mlp input
    # dimension unsatisfiable for any valid model_channels; following the original
    # house-diffusion semantics, the expanded points (18-dim) are used here.
    obs = (x_exp * jnp.tile(xtalpha, (1, 1, 9))
           - jnp.tile(output_decimal, (1, 1, 9)) * jnp.tile(epsalpha, (1, 1, 9)))
    bits = dec2bin((obs / 2.0 + 0.5) * 256.0).reshape(B, S, 16 * 9)
    # the binary-branch input only feeds bf16 matmuls: build the concat in bf16
    bin_in = jnp.concatenate([obs.astype(jnp.bfloat16),
                              bits.astype(jnp.bfloat16),
                              cond_emb.astype(jnp.bfloat16)], axis=2)   # (B,S,162+D)

    b = unflat(pallas_linear(flat(bin_in), params["bin_w1"], params["bin_b1"],
                             activation="relu"))
    # TODO(synk): binary_mlp wraps HouseDiffEncoder in nn.Sequential (no masks can
    # be passed); masks=None makes those layers skip the zero-mask adds entirely.
    b = encoder_layer(b, None, params["bin_enc1"], num_heads=1)
    b = encoder_layer(b, None, params["bin_enc2"], num_heads=1)
    # final (D -> 16) projection in plain JAX: 16 lanes would force masked stores
    output_binary = (jnp.dot(b.astype(jnp.bfloat16), params["bin_w2"],
                             preferred_element_type=jnp.float32) + params["bin_b2"])

    return (jnp.transpose(output_decimal, (0, 2, 1)),   # (B, out_channels, S)
            jnp.transpose(output_binary, (0, 2, 1)))    # (B, 16, S)


# --------------------------------- main --------------------------------------

if __name__ == "__main__":
    B, S = 2, 8
    in_channels = 18          # 2 coordinate channels expanded x9 by expand_points
    condition_channels = 16   # room_types(8) + corner_indices(4) + room_indices(4)
    model_channels = 32       # divisible by 4 heads, even (no timestep padding)
    out_channels = 2

    params = init_model_params(jax.random.PRNGKey(1), in_channels, condition_channels,
                               model_channels, out_channels)

    key = jax.random.PRNGKey(0)
    k = jax.random.split(key, 11)
    x = jax.random.normal(k[0], (B, 2, S), jnp.float32)            # (B, 2, S) coords
    timesteps = jax.random.randint(k[1], (B,), 0, 1000).astype(jnp.float32)
    xtalpha = jax.random.uniform(k[2], (B, S, 2), jnp.float32)
    epsalpha = jax.random.uniform(k[3], (B, S, 2), jnp.float32)
    connections = jax.random.randint(k[4], (B, S, 2), 0, S)
    door_mask = jax.random.normal(k[5], (S, S), jnp.float32) * 0.1
    self_mask = jax.random.normal(k[6], (S, S), jnp.float32) * 0.1
    gen_mask = jax.random.normal(k[7], (S, S), jnp.float32) * 0.1
    room_types = jax.random.normal(k[8], (B, S, 8), jnp.float32)
    corner_indices = jax.random.normal(k[9], (B, S, 4), jnp.float32)
    room_indices = jax.random.normal(k[10], (B, S, 4), jnp.float32)

    out_dec, out_bin = house_diff_transformer_forward(
        params, x, timesteps, xtalpha, epsalpha,
        connections=connections, door_mask=door_mask, self_mask=self_mask,
        gen_mask=gen_mask,
        conditions=[room_types, corner_indices, room_indices],
        model_channels=model_channels, out_channels=out_channels)

    jax.block_until_ready((out_dec, out_bin))
    assert out_dec.shape == (B, out_channels, S), out_dec.shape
    assert out_bin.shape == (B, 16, S), out_bin.shape
    assert jnp.all(jnp.isfinite(out_dec)) and jnp.all(jnp.isfinite(out_bin))
    print("KERNEL_OK")
</pallas_src>

<mosaic_0001>
module attributes {stable_mosaic.version = 11 : i64} {
  func.func @_copy(%arg0: i32, %arg1: memref<8x128xf32, #tpu.memory_space<vmem>>, %arg2: memref<8x128xf32, #tpu.memory_space<vmem>>) attributes {dimension_semantics = [#tpu.dimension_semantics<arbitrary>], iteration_bounds = array<i64: 2>, scalar_prefetch = 0 : i64, scratch_operands = 0 : i64, tpu.core_type = #tpu.core_type<tc>, window_params = [{pipeline_mode = #tpu.pipeline_mode<synchronous>, transform_indices = @transform_0, window_bounds = array<i64: 8, 128>}, {transform_indices = @transform_1, window_bounds = array<i64: 8, 128>}]} {
    %c0 = arith.constant 0 : index
    %c0_0 = arith.constant 0 : index
    %0 = vector.load %arg1[%c0, %c0_0] : memref<8x128xf32, #tpu.memory_space<vmem>>, vector<8x128xf32>
    %c0_1 = arith.constant 0 : index
    %c0_2 = arith.constant 0 : index
    %1 = vector.load %arg2[%c0_1, %c0_2] : memref<8x128xf32, #tpu.memory_space<vmem>>, vector<8x128xf32>
    tpu.vector_store %arg2[%c0_1, %c0_2], %0 {strides = array<i32>} : memref<8x128xf32, #tpu.memory_space<vmem>>, vector<8x128xf32>,
    return
  }
  func.func @transform_0(%arg0: i32) -> (i32, i32) {
    %c0_i32 = arith.constant 0 : i32
    %c0_i32_0 = arith.constant 0 : i32
    %c0_i32_1 = arith.constant 0 : i32
    return %c0_i32, %c0_i32_0 : i32, i32
  }
  func.func @transform_1(%arg0: i32) -> (i32, i32) {
    %c0_i32 = arith.constant 0 : i32
    %c0_i32_0 = arith.constant 0 : i32
    return %arg0, %c0_i32 : i32, i32
  }
}

module attributes {stable_mosaic.version = 11 : i64} {
  func.func @_linear_kernel(%arg0: i32, %arg1: memref<2x32xf32, #tpu.memory_space<vmem>>, %arg2: memref<32x32xbf16, #tpu.memory_space<vmem>>, %arg3: memref<1x32xf32, #tpu.memory_space<vmem>>, %arg4: memref<2x32xf32, #tpu.memory_space<vmem>>) attributes {dimension_semantics = [#tpu.dimension_semantics<parallel>], iteration_bounds = array<i64: 1>, scalar_prefetch = 0 : i64, scratch_operands = 0 : i64, tpu.core_type = #tpu.core_type<tc>, window_params = [{transform_indices = @transform_0, window_bounds = array<i64: 2, 32>}, {pipeline_mode = #tpu.pipeline_mode<synchronous>, transform_indices = @transform_1, window_bounds = array<i64: 32, 32>}, {pipeline_mode = #tpu.pipeline_mode<synchronous>, transform_indices = @transform_2, window_bounds = array<i64: 1, 32>}, {transform_indices = @transform_3, window_bounds = array<i64: 2, 32>}]} {
    %c0 = arith.constant 0 : index
    %c0_0 = arith.constant 0 : index
    %0 = vector.load %arg1[%c0, %c0_0] : memref<2x32xf32, #tpu.memory_space<vmem>>, vector<2x32xf32>
    %1 = arith.truncf %0 : vector<2x32xf32> to vector<2x32xbf16>
    %c0_1 = arith.constant 0 : index
    %c0_2 = arith.constant 0 : index
    %2 = vector.load %arg2[%c0_1, %c0_2] : memref<32x32xbf16, #tpu.memory_space<vmem>>, vector<32x32xbf16>
    %cst = arith.constant dense<0.000000e+00> : vector<2x32xf32>
    %3 = tpu.matmul %1, %2, %cst {dimension_numbers = #tpu.dot_dimension_numbers<[1], [0], [0], [1], [0, 0, 1, 1], [], []>} : vector<2x32xbf16>, vector<32x32xbf16>, vector<2x32xf32> -> vector<2x32xf32>
    %c0_3 = arith.constant 0 : index
    %c0_4 = arith.constant 0 : index
    %4 = vector.load %arg3[%c0_3, %c0_4] : memref<1x32xf32, #tpu.memory_space<vmem>>, vector<1x32xf32>
    %5 = vector.broadcast %4 : vector<1x32xf32> to vector<2x32xf32>
    %6 = arith.addf %3, %5 : vector<2x32xf32>
    %cst_5 = arith.constant 5.000000e-01 : f32
    %7 = vector.broadcast %cst_5 : f32 to vector<2x32xf32>
    %8 = arith.mulf %7, %6 : vector<2x32xf32>
    %9 = math.tanh %8 : vector<2x32xf32>
    %cst_6 = arith.constant 1.000000e+00 : f32
    %10 = vector.broadcast %cst_6 : f32 to vector<2x32xf32>
    %11 = arith.addf %9, %10 : vector<2x32xf32>
    %cst_7 = arith.constant 5.000000e-01 : f32
    %12 = vector.broadcast %cst_7 : f32 to vector<2x32xf32>
    %13 = arith.mulf %12, %11 : vector<2x32xf32>
    %14 = arith.mulf %6, %13 : vector<2x32xf32>
    %c0_8 = arith.constant 0 : index
    %c0_9 = arith.constant 0 : index
    %15 = vector.load %arg4[%c0_8, %c0_9] : memref<2x32xf32, #tpu.memory_space<vmem>>, vector<2x32xf32>
    tpu.vector_store %arg4[%c0_8, %c0_9], %14 {strides = array<i32>} : memref<2x32xf32, #tpu.memory_space<vmem>>, vector<2x32xf32>,
    return
  }
  func.func @transform_0(%arg0: i32) -> (i32, i32) {
    %c0_i32 = arith.constant 0 : i32
    %c0_i32_0 = arith.constant 0 : i32
    return %arg0, %c0_i32 : i32, i32
  }
  func.func @transform_1(%arg0: i32) -> (i32, i32) {
    %c0_i32 = arith.constant 0 : i32
    %c0_i32_0 = arith.constant 0 : i32
    %c0_i32_1 = arith.constant 0 : i32
    return %c0_i32, %c0_i32_0 : i32, i32
  }
  func.func @transform_2(%arg0: i32) -> (i32, i32) {
    %c0_i32 = arith.constant 0 : i32
    %c0_i32_0 = arith.constant 0 : i32
    %c0_i32_1 = arith.constant 0 : i32
    return %c0_i32, %c0_i32_0 : i32, i32
  }
  func.func @transform_3(%arg0: i32) -> (i32, i32) {
    %c0_i32 = arith.constant 0 : i32
    %c0_i32_0 = arith.constant 0 : i32
    return %arg0, %c0_i32 : i32, i32
  }
}

</mosaic_0001>

<llo_original>
// kernel: tpu_custom_call.1
$region0: #{tpu_custom_call.1}
  #allocation0 [shape = 'u32[]', space=smem, size = 0x4, offset = 0x4, fixed_abs, tag = 'smem constant byte address 0x4 - core index']
  #allocation1 [shape = 'u32[144,128]{1,0:T(1,128)}', space=vmem, size = 0x12000, scoped, tag = 'internal scratch']
  %s0 = inlined_call_operand.hbm [shape: f32[8,128], index: 0, kind: input, shape index: {}]
  %s1 = inlined_call_operand.hbm [shape: f32[16,128], index: 1, kind: output, shape index: {}]
  %s2 = sld [smem:[#allocation0]]
  $region41: #{tpu_custom_call.1} parent=0
    _
  %s4 = ssub.s32 1, %s2
  %s5 = scalar_select 0, %s4, %s2
  $region1: #{tpu_custom_call.1} parent=0
    #allocation2 [shape = 'u8[4096]{0}', space=vmem, size = 0x1000, scoped, tag = 'input window, operand 0, single buffered']
    #allocation3 [shape = 's32[2]{0}', space=sflag, size = 0x8, scoped, tag = 'scoped memory for tpu_custom_call.1']
    #allocation4 [shape = 's32[2]{0}', space=sflag, size = 0x8, scoped, tag = 'scoped memory for tpu_custom_call.1']
    #allocation5 [shape = 'u8[8192]{0}', space=vmem, size = 0x2000, scoped, tag = 'output window, operand 0']
    %6 = vsyncpa [#allocation3], 0
    %7 = vsyncpa [#allocation4], 0
    %s8 = scalar_lea.sflag [#allocation4], 1
    %9 = vsyncpa %s8, 0
    loop: start=0, step=1, limit=4
    $region2: #{tpu_custom_call.1} parent=1 // loop_pre_header
      _
    $region3: #{tpu_custom_call.1} parent=1 // loop_header
      %s11 = sphi 0, %s15
      %p12 = scmp.ge.s32.totalorder %s11, 4
      %s19 = sphi 0, %s19
      %s21 = sphi 0, %s19
      %s22 = sphi 0, %s21
      %s36 = sphi 0, %s22
      %s42 = sphi 0, %s44
      %s45 = sphi 0, %s42
      %s46 = sphi 0, %s45
      %s62 = sphi 0, %s46
    $region4: #{tpu_custom_call.1} parent=1 // loop_header_branch
      %14 = sbr.rel (%p12) target = $region8
    $region5: #{tpu_custom_call.1} parent=1 // loop_body
      %s16 = ssub.s32 %s11, 1
      %s17 = ssub.s32 %s11, 2
      %s18 = sadd.s32 %s11, 1
      %s20 = sadd.s32 %s19, 1
      %p23 = scmp.eq.s32.totalorder %s11, 1
      %p24 = scmp.ne.s32.totalorder %s19, %s21
      %p25 = scmp.eq.s32.totalorder %s11, 0
      %p26 = por %p24, %p25
      %p27 = scmp.ne.s32.totalorder %s19, %s21
      %p28 = scmp.eq.s32.totalorder %s16, 1
      %p29 = por %p27, %p28
      %p30 = scmp.ne.s32.totalorder %s21, %s22
      %p31 = scmp.eq.s32.totalorder %s16, 0
      %p32 = por %p30, %p31
      %p33 = scmp.ne.s32.totalorder %s21, %s22
      %p34 = scmp.eq.s32.totalorder %s17, 1
      %p35 = por %p33, %p34
      %p37 = scmp.ne.s32.totalorder %s22, %s36
      %p38 = scmp.eq.s32.totalorder %s17, 0
      %p39 = por %p37, %p38
      %s40 = ssub.s32 %s11, %s18
      %p41 = scmp.eq.s32.totalorder %s40, 0
      %s43 = sadd.s32 %s42, 1
      %s44 = scalar_select %p41, %s42, %s43
      %p47 = pneg %p41
      %p48 = scmp.eq.s32.totalorder %s11, 1
      %p49 = por %p47, %p48
      %p50 = scmp.ne.s32.totalorder %s42, %s45
      %p51 = scmp.eq.s32.totalorder %s11, 0
      %p52 = por %p50, %p51
      %p53 = scmp.ne.s32.totalorder %s42, %s45
      %p54 = scmp.eq.s32.totalorder %s16, 1
      %p55 = por %p53, %p54
      %p56 = scmp.ne.s32.totalorder %s45, %s46
      %p57 = scmp.eq.s32.totalorder %s16, 0
      %p58 = por %p56, %p57
      %p59 = scmp.ne.s32.totalorder %s45, %s46
      %p60 = scmp.eq.s32.totalorder %s17, 1
      %p61 = por %p59, %p60
      %p63 = scmp.ne.s32.totalorder %s46, %s62
      %p64 = scmp.eq.s32.totalorder %s17, 0
      %p65 = por %p63, %p64
      %p66 = scmp.le.s32.totalorder 1, %s11
      %p67 = scmp.lt.s32.totalorder %s11, 3
      %p68 = pnand %p66, %p67
      %p69 = pneg %p68
      // Predicated region
      $region9: #{tpu_custom_call.1} parent=5 // pred_check
        _
      $region10: #{tpu_custom_call.1} parent=5 // pred_check_branch
        %71 = sbr.rel (%p68) target = $region12
      $region11: #{tpu_custom_call.1} parent=5 // pred_region
        %s72 = ssub.s32 %s11, 1
        // Predicated region
        $region13: #{tpu_custom_call.1} parent=11 // pred_check
          %p73 = pneg %p32
        $region14: #{tpu_custom_call.1} parent=11 // pred_check_branch
          %75 = sbr.rel (%p73) target = $region16
        $region15: #{tpu_custom_call.1} parent=11 // pred_region
          %s77 = ssub.s32 128, 128
          %78 = vsyncadd [#allocation3], %s77
          %s80 = sshll.u32 [#allocation2], 4
          %s81 = int_to_ptr.vmem [resolvable:$true] %s80
          %83 = dma.hbm_to_vmem [thread:$0]  %s0, 128, %s81, [#allocation3]
        $region16: #{tpu_custom_call.1} parent=11 // pred_fallthru
          _
      $region12: #{tpu_custom_call.1} parent=5 // pred_fallthru
        _
      %p84 = scmp.lt.s32.totalorder %s11, 2
      // Predicated region
      $region17: #{tpu_custom_call.1} parent=5 // pred_check
        %p85 = pneg %p84
      $region18: #{tpu_custom_call.1} parent=5 // pred_check_branch
        %87 = sbr.rel (%p85) target = $region20
      $region19: #{tpu_custom_call.1} parent=5 // pred_region
        _
      $region20: #{tpu_custom_call.1} parent=5 // pred_fallthru
        _
      %p88 = scmp.le.s32.totalorder 1, %s11
      %p89 = scmp.lt.s32.totalorder %s11, 3
      %p90 = pnand %p88, %p89
      %p91 = pneg %p90
      // Predicated region
      $region21: #{tpu_custom_call.1} parent=5 // pred_check
        _
      $region22: #{tpu_custom_call.1} parent=5 // pred_check_branch
        %93 = sbr.rel (%p90) target = $region24
      $region23: #{tpu_custom_call.1} parent=5 // pred_region
        %s94 = ssub.s32 %s11, 1
        // Predicated region
        $region25: #{tpu_custom_call.1} parent=23 // pred_check
          %p95 = pneg %p32
        $region26: #{tpu_custom_call.1} parent=23 // pred_check_branch
          %97 = sbr.rel (%p95) target = $region28
        $region27: #{tpu_custom_call.1} parent=23 // pred_region
          %98 = dma.done [#allocation3], 128
        $region28: #{tpu_custom_call.1} parent=23 // pred_fallthru
          _
        %p99 = pneg %p32
        %p100 = pneg %p29
        %p101 = pneg %p58
        %p102 = pneg %p55
        %s103 = sand.u32 %s45, 1
        %s104 = scalar_lea.sflag [#allocation4], %s103
        %s105 = sand.u32 %s45, 1
        %s106 = smul.addr %s105, 8
        %s107 = scalar_lea.vmem [#allocation5], %s106
        %v108 = vld [vmem:[#allocation2] sm:$0xff]
        %109 = vst [vmem:[%s107] sm:$0xff] %v108
        %s110 = sand.u32 %s45, 1
        %s111 = scalar_lea.sflag [#allocation4], %s110
        %s112 = sand.u32 %s45, 1
        %s113 = smul.addr %s112, 8
        %s114 = scalar_lea.vmem [#allocation5], %s113
        // Predicated region
        $region29: #{tpu_custom_call.1} parent=23 // pred_check
          %p115 = pneg %p55
        $region30: #{tpu_custom_call.1} parent=23 // pred_check_branch
          %117 = sbr.rel (%p115) target = $region32
        $region31: #{tpu_custom_call.1} parent=23 // pred_region
          %s119 = ssub.s32 128, 128
          %120 = vsyncadd %s111, %s119
          %s121 = smul.addr %s16, 128
          %s122 = scalar_lea.hbm %s1, %s121
          %s124 = sshll.u32 %s114, 4
          %s125 = int_to_ptr.vmem [resolvable:$true] %s124
          %127 = dma.vmem_to_hbm [thread:$0]  %s125, 128, %s122, %s111
        $region32: #{tpu_custom_call.1} parent=23 // pred_fallthru
          _
      $region24: #{tpu_custom_call.1} parent=5 // pred_fallthru
        _
      %p128 = scmp.le.s32.totalorder 2, %s11
      // Predicated region
      $region33: #{tpu_custom_call.1} parent=5 // pred_check
        %p129 = pneg %p128
      $region34: #{tpu_custom_call.1} parent=5 // pred_check_branch
        %131 = sbr.rel (%p129) target = $region36
      $region35: #{tpu_custom_call.1} parent=5 // pred_region
        %s132 = ssub.s32 %s11, 2
        // Predicated region
        $region37: #{tpu_custom_call.1} parent=35 // pred_check
          %p133 = pneg %p61
        $region38: #{tpu_custom_call.1} parent=35 // pred_check_branch
          %135 = sbr.rel (%p133) target = $region40
        $region39: #{tpu_custom_call.1} parent=35 // pred_region
          %s136 = sand.u32 %s46, 1
          %s137 = scalar_lea.sflag [#allocation4], %s136
          %s138 = sand.u32 %s46, 1
          %s139 = smul.addr %s138, 8
          %s140 = scalar_lea.vmem [#allocation5], %s139
          %141 = dma.done %s137, 128
        $region40: #{tpu_custom_call.1} parent=35 // pred_fallthru
          _
      $region36: #{tpu_custom_call.1} parent=5 // pred_fallthru
        _
    $region6: #{tpu_custom_call.1} parent=1 // loop_footer
      %s15 = sadd.s32 1, %s11
    $region7: #{tpu_custom_call.1} parent=1 // loop_footer_branch
      %10 = sbr.rel target = $region3
    $region8: #{tpu_custom_call.1} parent=1 // loop_exit
      _
    %142 = vsyncpa [#allocation3], 1
    %s143 = scalar_lea.sflag [#allocation3], 1
    %144 = vsyncpa %s143, 1
    %145 = vsyncpa [#allocation4], 1
    %s146 = scalar_lea.sflag [#allocation4], 1
    %147 = vsyncpa %s146, 1

// kernel: tpu_custom_call.1
$region0: #{tpu_custom_call.1}
  #allocation0 [shape = 'u32[]', space=smem, size = 0x4, offset = 0x4, fixed_abs, tag = 'smem constant byte address 0x4 - core index']
  #allocation1 [shape = 'u32[144,128]{1,0:T(1,128)}', space=vmem, size = 0x12000, scoped, tag = 'internal scratch']
  %s0 = inlined_call_operand.hbm [shape: f32[2,32], index: 0, kind: input, shape index: {}]
  %s1 = inlined_call_operand.hbm [shape: bf16[32,32], index: 1, kind: input, shape index: {}]
  %s2 = inlined_call_operand.vmem [shape: f32[1,32], index: 2, kind: input, shape index: {}]
  %s3 = inlined_call_operand.hbm [shape: f32[2,32], index: 3, kind: output, shape index: {}]
  %s4 = sld [smem:[#allocation0]]
  $region30: #{tpu_custom_call.1} parent=0
    _
  %s6 = ssub.s32 1, %s4
  %s7 = scalar_select 0, %s6, %s4
  $region1: #{tpu_custom_call.1} parent=0
    #allocation2 [shape = 'u8[1024]{0}', space=vmem, size = 0x400, scoped, tag = 'input window, operand 0, single buffered']
    #allocation3 [shape = 's32[1]{0}', space=sflag, size = 0x4, scoped, tag = 'scoped memory for tpu_custom_call.1']
    #allocation4 [shape = 's32[1]{0}', space=sflag, size = 0x4, scoped, tag = 'scoped memory for tpu_custom_call.1']
    #allocation5 [shape = 'u8[8192]{0}', space=vmem, size = 0x2000, scoped, tag = 'input window, operand 1, single buffered']
    #allocation6 [shape = 's32[1]{0}', space=sflag, size = 0x4, scoped, tag = 'scoped memory for tpu_custom_call.1']
    #allocation7 [shape = 'u8[1024]{0}', space=vmem, size = 0x400, scoped, tag = 'output window, operand 0, single buffered']
    %8 = vsyncpa [#allocation3], 0
    %9 = vsyncpa [#allocation6], 0
    %10 = vsyncpa [#allocation4], 0
    // Predicated region
    $region2: #{tpu_custom_call.1} parent=1 // pred_check
      _
    $region3: #{tpu_custom_call.1} parent=1 // pred_check_branch
      %12 = sbr.rel (0) target = $region5
    $region4: #{tpu_custom_call.1} parent=1 // pred_region
      %s14 = ssub.s32 32, 32
      %15 = vsyncadd [#allocation3], %s14
      %s17 = sshll.u32 [#allocation2], 4
      %s18 = int_to_ptr.vmem [resolvable:$true] %s17
      %20 = dma.hbm_to_vmem [thread:$0]  %s0, 32, %s18, [#allocation3]
    $region5: #{tpu_custom_call.1} parent=1 // pred_fallthru
      _
    // Predicated region
    $region6: #{tpu_custom_call.1} parent=1 // pred_check
      _
    $region7: #{tpu_custom_call.1} parent=1 // pred_check_branch
      %22 = sbr.rel (0) target = $region9
    $region8: #{tpu_custom_call.1} parent=1 // pred_region
      %s24 = ssub.s32 256, 256
      %25 = vsyncadd [#allocation6], %s24
      %s26 = sshll.u32 [#allocation5], 4
      %s27 = int_to_ptr.vmem [resolvable:$true] %s26
      %32 = dma.hbm_to_vmem [thread:$0]  %s1, 256, %s27, [#allocation6], 64, 64, 4
    $region9: #{tpu_custom_call.1} parent=1 // pred_fallthru
      _
    // Predicated region
    $region10: #{tpu_custom_call.1} parent=1 // pred_check
      _
    $region11: #{tpu_custom_call.1} parent=1 // pred_check_branch
      %34 = sbr.rel (0) target = $region13
    $region12: #{tpu_custom_call.1} parent=1 // pred_region
      _
    $region13: #{tpu_custom_call.1} parent=1 // pred_fallthru
      _
    // Predicated region
    $region14: #{tpu_custom_call.1} parent=1 // pred_check
      _
    $region15: #{tpu_custom_call.1} parent=1 // pred_check_branch
      %36 = sbr.rel (0) target = $region17
    $region16: #{tpu_custom_call.1} parent=1 // pred_region
      %37 = dma.done [#allocation3], 32
    $region17: #{tpu_custom_call.1} parent=1 // pred_fallthru
      _
    // Predicated region
    $region18: #{tpu_custom_call.1} parent=1 // pred_check
      _
    $region19: #{tpu_custom_call.1} parent=1 // pred_check_branch
      %39 = sbr.rel (0) target = $region21
    $region20: #{tpu_custom_call.1} parent=1 // pred_region
      %40 = dma.done [#allocation6], 256
    $region21: #{tpu_custom_call.1} parent=1 // pred_fallthru
      _
    %v42 = vld [vmem:[#allocation2] sm:$0x3]
    %v43 = vpack.c.bf16 %v42, %v42
    %v44 = vld [vmem:[#allocation5] sm:$0xf]
    %v45 = vld [vmem:[#allocation5 + $0x4] sm:$0xf]
    %v46 = vld [vmem:[#allocation5 + $0x8] sm:$0xf]
    %v47 = vld [vmem:[#allocation5 + $0xc] sm:$0xf]
    %v48 = vld [vmem:[%s2] sm:$0x1]
    %v50 = vlaneseq
    %v51 = vshrl.u32 %v50, 7
    %v52 = vsub.s32 0, %v51
    %v53 = vrot.slane %v48, %v52
    %v59 = vunpack.c.l.b16 %v44
    %v60 = vunpack.c.l.b16 %v45
    %v61 = vunpack.c.l.b16 %v46
    %v62 = vunpack.c.l.b16 %v47
    %v63 = vpack.c.b16 %v60, %v59
    %v64 = vpack.c.b16 %v62, %v61
    %vm67 = vcmask 261120
    %v69 = vsel %vm67, %v43, 0
    %71 = vmatprep.subr.bf16.mxu0 0
    %72 = vmatpush1.bf16.msra.mxu0 %v63
    %73 = vmatprep.subr.bf16.mxu0 0
    %74 = vmatpush1.bf16.msra.mxu0 %v64
    %75 = vmatprep.subr.bf16.mxu0 0
    %76 = vmatpush1.bf16.msra.mxu0 0
    %77 = vmatprep.subr.bf16.mxu0 0
    %78 = vmatpush1.bf16.msra.mxu0 0
    %79 = vmatprep.subr.bf16.mxu0 0
    %80 = vmatpush1.bf16.msra.mxu0 0
    %81 = vmatprep.subr.bf16.mxu0 0
    %82 = vmatpush1.bf16.msra.mxu0 0
    %83 = vmatprep.subr.bf16.mxu0 0
    %84 = vmatpush1.bf16.msra.mxu0 0
    %85 = vmatprep.subr.bf16.mxu0 0
    %86 = vmatpush1.bf16.msra.mxu0 0
    %87 = vmatprep.subr.bf16.mxu0 0
    %88 = vmatpush1.bf16.msra.mxu0 0
    %89 = vmatprep.subr.bf16.mxu0 0
    %90 = vmatpush1.bf16.msra.mxu0 0
    %91 = vmatprep.subr.bf16.mxu0 0
    %92 = vmatpush1.bf16.msra.mxu0 0
    %93 = vmatprep.subr.bf16.mxu0 0
    %94 = vmatpush1.bf16.msra.mxu0 0
    %95 = vmatprep.subr.bf16.mxu0 0
    %96 = vmatpush1.bf16.msra.mxu0 0
    %97 = vmatprep.subr.bf16.mxu0 0
    %98 = vmatpush1.bf16.msra.mxu0 0
    %99 = vmatprep.subr.bf16.mxu0 0
    %100 = vmatpush1.bf16.msra.mxu0 0
    %101 = vmatprep.subr.bf16.mxu0 0
    %102 = vmatpush1.bf16.msra.mxu0 0
    %103 = vmatprep.mubr.bf16.mxu0 0
    %104 = vmatmul.mubr.bf16.gmra.mrb[0].mxu0 %v69
    %v105 = vpop.f32.mrb[0].mxu0
    %v106 = vadd.f32 %v53, %v105
    %v107 = vpop.f32.mrb[0].mxu0
    %v108 = vpop.f32.mrb[0].mxu0
    %v109 = vpop.f32.mrb[0].mxu0
    %110 = vdwg.mxu0
    %v111 = vmul.f32 %v106, 0.5
    %v112 = vtanh.pop %v111
    %v113 = vadd.f32 %v112, 1.0
    %v114 = vmul.f32 %v113, 0.5
    %v115 = vmul.f32 %v106, %v114
    %vm116 = vcmask 254976
    %117 = vst.msk [vmem:[#allocation7] sm:$0x3] %vm116, %v115
    // Predicated region
    $region22: #{tpu_custom_call.1} parent=1 // pred_check
      _
    $region23: #{tpu_custom_call.1} parent=1 // pred_check_branch
      %119 = sbr.rel (0) target = $region25
    $region24: #{tpu_custom_call.1} parent=1 // pred_region
      %s121 = ssub.s32 32, 32
      %122 = vsyncadd [#allocation4], %s121
      %s124 = sshll.u32 [#allocation7], 4
      %s125 = int_to_ptr.vmem [resolvable:$true] %s124
      %127 = dma.vmem_to_hbm [thread:$0]  %s125, 32, %s3, [#allocation4]
    $region25: #{tpu_custom_call.1} parent=1 // pred_fallthru
      _
    // Predicated region
    $region26: #{tpu_custom_call.1} parent=1 // pred_check
      _
    $region27: #{tpu_custom_call.1} parent=1 // pred_check_branch
      %129 = sbr.rel (0) target = $region29
    $region28: #{tpu_custom_call.1} parent=1 // pred_region
      %130 = dma.done [#allocation4], 32
    $region29: #{tpu_custom_call.1} parent=1 // pred_fallthru
      _
    %131 = vsyncpa [#allocation3], 1
    %132 = vsyncpa [#allocation6], 1
    %133 = vsyncpa [#allocation4], 1

</llo_original>
